<compile_context>
chip_gen: v7x
topology: tpu7x:2x2x1
jax: 0.10.0
libtpu: 0.0.40
codegen_flags: <defaults>
</compile_context>

<pallas_src>
import jax
import jax.numpy as jnp
import numpy as np
from jax import lax
from jax.experimental import pallas as pl
from jax.experimental.pallas import tpu as pltpu


# -------------------------------- kernel -----------------------------------
def _make_crosscon_kernel(V, B, inv_temp, neg_scale, eps):
    """Build the fused CrossConLoss kernel with compile-time constants baked in."""
    VB = V * B

    def kernel(feats_ref, masks_ref, loss_ref):
        # feats_ref: (VB, D) bf16     masks_ref: (2, VB, VB) f32
        #   masks_ref[0] = tiled label-equality mask (diag removed)
        #   masks_ref[1] = tiled off-diagonal ("all") mask
        f = feats_ref[...]                                      # (VB, D) bf16

        # One stacked matmul for all V*V (anchor, contrast) pairs.
        s = lax.dot_general(
            f, f,
            dimension_numbers=(((1,), (1,)), ((), ())),         # contract feature dim
            preferred_element_type=jnp.float32,
        ) * inv_temp                                            # (VB, VB) f32

        # Per-(anchor-row, contrast-view-block) row-max subtraction.
        # IMPORTANT: the max is per B-wide column block, not a global row max,
        # to match the reference's per-(view,con) normalization.
        col = lax.broadcasted_iota(jnp.int32, (VB, VB), 1)
        bm = jnp.zeros((VB, VB), jnp.float32)
        for w in range(V):                                      # trace-time unrolled (V=3)
            m_w = jnp.max(s[:, w * B:(w + 1) * B], axis=1, keepdims=True)   # (VB, 1)
            in_blk = (col >= w * B) & (col < (w + 1) * B)
            bm = jnp.where(in_blk, m_w, bm)

        e = jnp.exp(s - bm)                                     # single exp over (VB, VB)

        # Masked row sums over the full VB-wide rows (sums over contrast views commute).
        pos = jnp.sum(e * masks_ref[0], axis=1, keepdims=True)  # (VB, 1)
        alls = jnp.sum(e * masks_ref[1], axis=1, keepdims=True) # (VB, 1)

        l = jnp.log(pos + eps) - jnp.log(alls + eps)            # (VB, 1)
        loss_ref[...] = neg_scale * jnp.sum(l, axis=0, keepdims=True)   # (1, 1)

    return kernel


# ------------------------------- wrapper ------------------------------------
def crosscon_loss_forward(features, labels, temperature=0.07, base_temperature=0.07):
    """features: (V, B, D) array (the stacked views); labels: (B,) ints."""
    feats = jnp.asarray(features, jnp.float32)
    V, B, D = feats.shape
    VB = V * B

    # Loop-invariant masks, hoisted to the wrapper and packed into ONE input DMA.
    lab = jnp.asarray(labels, jnp.int32).reshape(B, 1)
    label_eq = (lab == lab.T).astype(jnp.float32)
    offdiag = jnp.ones((B, B), jnp.float32) - jnp.eye(B, dtype=jnp.float32)
    pos_mask = label_eq * offdiag
    masks = jnp.stack(
        [jnp.tile(pos_mask, (V, V)), jnp.tile(offdiag, (V, V))], axis=0
    )                                                            # (2, VB, VB) f32

    # Stack views and cast matmul operands to bf16 (f32 accumulation in-kernel).
    feats_bf16 = feats.reshape(VB, D).astype(jnp.bfloat16)

    kernel = _make_crosscon_kernel(
        V, B,
        inv_temp=float(1.0 / temperature),
        neg_scale=float(-(temperature / base_temperature) / (B * V)),
        eps=1e-6,
    )

    loss = pl.pallas_call(
        kernel,
        out_shape=jax.ShapeDtypeStruct((1, 1), jnp.float32),
        in_specs=[
            pl.BlockSpec(memory_space=pltpu.MemorySpace.VMEM),   # features (VB, D) bf16
            pl.BlockSpec(memory_space=pltpu.MemorySpace.VMEM),   # packed masks (2, VB, VB)
        ],
        out_specs=pl.BlockSpec(memory_space=pltpu.MemorySpace.VMEM),
    )(feats_bf16, masks)
    return loss[0, 0]


# ------------------------------ pure-JAX ref ---------------------------------
def crosscon_reference(features, labels, temperature=0.07, base_temperature=0.07):
    feats = jnp.asarray(features, jnp.float32)
    V, B, D = feats.shape
    lab = jnp.asarray(labels, jnp.int32).reshape(B, 1)
    mask = (lab == lab.T).astype(jnp.float32)
    logits_mask = jnp.ones((B, B), jnp.float32) - jnp.eye(B, dtype=jnp.float32)
    mask = mask * logits_mask

    loss = jnp.float32(0.0)
    eps = 1e-6
    for view in range(V):
        anchor = feats[view]
        exp_pos = jnp.zeros((B,), jnp.float32)
        exp_all = jnp.zeros((B,), jnp.float32)
        for con in range(V):
            contrast = feats[(view + con) % V]
            adc = jnp.matmul(anchor, contrast.T) / temperature
            adc = adc - jnp.max(adc, axis=1, keepdims=True)
            e = jnp.exp(adc)
            exp_pos = exp_pos + (e * mask).sum(1)
            exp_all = exp_all + (e * logits_mask).sum(1)
        l_tmp = jnp.log(exp_pos + eps) - jnp.log(exp_all + eps)
        loss = loss + l_tmp.sum(0)
    loss = temperature / base_temperature * loss / (B * V)
    return -loss


if __name__ == "__main__":
    V, B, D = 3, 8, 32          # three views, batch 8, feature dim 32

    key = jax.random.PRNGKey(0)
    kf, kl = jax.random.split(key)
    feats = jax.random.normal(kf, (V, B, D), dtype=jnp.float32)
    feats = feats / jnp.linalg.norm(feats, axis=-1, keepdims=True)
    # Snap features to bf16-representable values so the kernel's bf16-operand
    # MXU path and the f32 XLA reference agree to f32-accumulation precision.
    feats = feats.astype(jnp.bfloat16).astype(jnp.float32)
    labels = jax.random.randint(kl, (B,), 0, 4, dtype=jnp.int32)

    loss = crosscon_loss_forward(feats, labels)
    loss = jax.block_until_ready(loss)

    ref = jax.block_until_ready(crosscon_reference(feats, labels))
    np.testing.assert_allclose(np.asarray(loss), np.asarray(ref),
                               rtol=2e-3, atol=2e-3)
    print("KERNEL_OK")
</pallas_src>

<mosaic_0001>
module attributes {stable_mosaic.version = 11 : i64} {
  func.func @kernel(%arg0: memref<24x32xbf16, #tpu.memory_space<vmem>>, %arg1: memref<2x24x24xf32, #tpu.memory_space<vmem>>, %arg2: memref<1x1xf32, #tpu.memory_space<vmem>>) attributes {dimension_semantics = [], scalar_prefetch = 0 : i64, scratch_operands = 0 : i64, tpu.core_type = #tpu.core_type<tc>} {
    %c0 = arith.constant 0 : index
    %c0_0 = arith.constant 0 : index
    %0 = vector.load %arg0[%c0, %c0_0] : memref<24x32xbf16, #tpu.memory_space<vmem>>, vector<24x32xbf16>
    %cst = arith.constant dense<0.000000e+00> : vector<24x24xf32>
    %1 = tpu.matmul %0, %0, %cst {dimension_numbers = #tpu.dot_dimension_numbers<[1], [1], [0], [0], [0, 0, 1, 0], [], []>} : vector<24x32xbf16>, vector<24x32xbf16>, vector<24x24xf32> -> vector<24x24xf32>
    %cst_1 = arith.constant 14.2857141 : f32
    %2 = vector.broadcast %cst_1 : f32 to vector<24x24xf32>
    %3 = arith.mulf %1, %2 : vector<24x24xf32>
    %4 = tpu.iota {dimensions = array<i32: 1>} : vector<24x24xi32>
    %cst_2 = arith.constant 0.000000e+00 : f32
    %5 = vector.broadcast %cst_2 : f32 to vector<24x24xf32>
    %6 = vector.extract_strided_slice %3 {offsets = [0, 0], sizes = [24, 8], strides = [1, 1]} : vector<24x24xf32> to vector<24x8xf32>
    %cst_3 = arith.constant dense<0xFF800000> : vector<24xf32>
    %7 = vector.multi_reduction <maximumf>, %6, %cst_3 [1] : vector<24x8xf32> to vector<24xf32>
    %8 = vector.shape_cast %7 : vector<24xf32> to vector<24x1xf32>
    %c0_i32 = arith.constant 0 : i32
    %9 = vector.broadcast %c0_i32 : i32 to vector<24x24xi32>
    %10 = arith.cmpi sge, %4, %9 : vector<24x24xi32>
    %c8_i32 = arith.constant 8 : i32
    %11 = vector.broadcast %c8_i32 : i32 to vector<24x24xi32>
    %12 = arith.cmpi slt, %4, %11 : vector<24x24xi32>
    %13 = arith.andi %10, %12 : vector<24x24xi1>
    %14 = vector.shape_cast %8 : vector<24x1xf32> to vector<24x1xf32>
    %15 = vector.broadcast %14 : vector<24x1xf32> to vector<24x24xf32>
    %16 = arith.select %13, %15, %5 : vector<24x24xi1>, vector<24x24xf32>
    %17 = vector.extract_strided_slice %3 {offsets = [0, 8], sizes = [24, 8], strides = [1, 1]} : vector<24x24xf32> to vector<24x8xf32>
    %cst_4 = arith.constant dense<0xFF800000> : vector<24xf32>
    %18 = vector.multi_reduction <maximumf>, %17, %cst_4 [1] : vector<24x8xf32> to vector<24xf32>
    %19 = vector.shape_cast %18 : vector<24xf32> to vector<24x1xf32>
    %c8_i32_5 = arith.constant 8 : i32
    %20 = vector.broadcast %c8_i32_5 : i32 to vector<24x24xi32>
    %21 = arith.cmpi sge, %4, %20 : vector<24x24xi32>
    %c16_i32 = arith.constant 16 : i32
    %22 = vector.broadcast %c16_i32 : i32 to vector<24x24xi32>
    %23 = arith.cmpi slt, %4, %22 : vector<24x24xi32>
    %24 = arith.andi %21, %23 : vector<24x24xi1>
    %25 = vector.shape_cast %19 : vector<24x1xf32> to vector<24x1xf32>
    %26 = vector.broadcast %25 : vector<24x1xf32> to vector<24x24xf32>
    %27 = arith.select %24, %26, %16 : vector<24x24xi1>, vector<24x24xf32>
    %28 = vector.extract_strided_slice %3 {offsets = [0, 16], sizes = [24, 8], strides = [1, 1]} : vector<24x24xf32> to vector<24x8xf32>
    %cst_6 = arith.constant dense<0xFF800000> : vector<24xf32>
    %29 = vector.multi_reduction <maximumf>, %28, %cst_6 [1] : vector<24x8xf32> to vector<24xf32>
    %30 = vector.shape_cast %29 : vector<24xf32> to vector<24x1xf32>
    %c16_i32_7 = arith.constant 16 : i32
    %31 = vector.broadcast %c16_i32_7 : i32 to vector<24x24xi32>
    %32 = arith.cmpi sge, %4, %31 : vector<24x24xi32>
    %c24_i32 = arith.constant 24 : i32
    %33 = vector.broadcast %c24_i32 : i32 to vector<24x24xi32>
    %34 = arith.cmpi slt, %4, %33 : vector<24x24xi32>
    %35 = arith.andi %32, %34 : vector<24x24xi1>
    %36 = vector.shape_cast %30 : vector<24x1xf32> to vector<24x1xf32>
    %37 = vector.broadcast %36 : vector<24x1xf32> to vector<24x24xf32>
    %38 = arith.select %35, %37, %27 : vector<24x24xi1>, vector<24x24xf32>
    %39 = arith.subf %3, %38 : vector<24x24xf32>
    %40 = math.exp %39 : vector<24x24xf32>
    %c0_8 = arith.constant 0 : index
    %c0_9 = arith.constant 0 : index
    %c0_10 = arith.constant 0 : index
    %41 = vector.load %arg1[%c0_8, %c0_9, %c0_10] : memref<2x24x24xf32, #tpu.memory_space<vmem>>, vector<1x24x24xf32>
    %42 = vector.shape_cast %41 : vector<1x24x24xf32> to vector<24x24xf32>
    %43 = arith.mulf %40, %42 : vector<24x24xf32>
    %cst_11 = arith.constant dense<0.000000e+00> : vector<24xf32>
    %44 = vector.multi_reduction <add>, %43, %cst_11 [1] : vector<24x24xf32> to vector<24xf32>
    %45 = vector.shape_cast %44 : vector<24xf32> to vector<24x1xf32>
    %c1 = arith.constant 1 : index
    %c0_12 = arith.constant 0 : index
    %c0_13 = arith.constant 0 : index
    %46 = vector.load %arg1[%c1, %c0_12, %c0_13] : memref<2x24x24xf32, #tpu.memory_space<vmem>>, vector<1x24x24xf32>
    %47 = vector.shape_cast %46 : vector<1x24x24xf32> to vector<24x24xf32>
    %48 = arith.mulf %40, %47 : vector<24x24xf32>
    %cst_14 = arith.constant dense<0.000000e+00> : vector<24xf32>
    %49 = vector.multi_reduction <add>, %48, %cst_14 [1] : vector<24x24xf32> to vector<24xf32>
    %50 = vector.shape_cast %49 : vector<24xf32> to vector<24x1xf32>
    %cst_15 = arith.constant 9.99999997E-7 : f32
    %51 = vector.broadcast %cst_15 : f32 to vector<24x1xf32>
    %52 = arith.addf %45, %51 : vector<24x1xf32>
    %53 = math.log %52 : vector<24x1xf32>
    %cst_16 = arith.constant 9.99999997E-7 : f32
    %54 = vector.broadcast %cst_16 : f32 to vector<24x1xf32>
    %55 = arith.addf %50, %54 : vector<24x1xf32>
    %56 = math.log %55 : vector<24x1xf32>
    %57 = arith.subf %53, %56 : vector<24x1xf32>
    %cst_17 = arith.constant dense<0.000000e+00> : vector<1xf32>
    %58 = vector.multi_reduction <add>, %57, %cst_17 [0] : vector<24x1xf32> to vector<1xf32>
    %59 = vector.shape_cast %58 : vector<1xf32> to vector<1x1xf32>
    %cst_18 = arith.constant -0.0416666679 : f32
    %60 = vector.broadcast %cst_18 : f32 to vector<1x1xf32>
    %61 = arith.mulf %60, %59 : vector<1x1xf32>
    %c0_19 = arith.constant 0 : index
    %c0_20 = arith.constant 0 : index
    %62 = vector.load %arg2[%c0_19, %c0_20] : memref<1x1xf32, #tpu.memory_space<vmem>>, vector<1x1xf32>
    tpu.vector_store %arg2[%c0_19, %c0_20], %61 {strides = array<i32>} : memref<1x1xf32, #tpu.memory_space<vmem>>, vector<1x1xf32>,
    return
  }
}

</mosaic_0001>

<llo_original>
// kernel: tpu_custom_call.1
$region0: #{tpu_custom_call.1}
  #allocation0 [shape = 'u32[]', space=smem, size = 0x4, offset = 0x4, fixed_abs, tag = 'smem constant byte address 0x4 - core index']
  #allocation1 [shape = 'u32[144,128]{1,0:T(1,128)}', space=vmem, size = 0x12000, scoped, tag = 'internal scratch']
  %s0 = inlined_call_operand.hbm [shape: bf16[24,32], index: 0, kind: input, shape index: {}]
  %s1 = inlined_call_operand.hbm [shape: f32[2,24,24], index: 1, kind: input, shape index: {}]
  %s2 = inlined_call_operand.hbm [shape: f32[1,1], index: 2, kind: output, shape index: {}]
  %s3 = sld [smem:[#allocation0]]
  $region26: #{tpu_custom_call.1} parent=0
    _
  %s5 = ssub.s32 1, %s3
  %s6 = scalar_select 0, %s5, %s3
  $region1: #{tpu_custom_call.1} parent=0
    #allocation2 [shape = 'u8[6144]{0}', space=vmem, size = 0x1800, scoped, tag = 'input window, operand 0, single buffered']
    #allocation3 [shape = 's32[1]{0}', space=sflag, size = 0x4, scoped, tag = 'scoped memory for tpu_custom_call.1']
    #allocation4 [shape = 's32[1]{0}', space=sflag, size = 0x4, scoped, tag = 'scoped memory for tpu_custom_call.1']
    #allocation5 [shape = 'u8[24576]{0}', space=vmem, size = 0x6000, scoped, tag = 'input window, operand 1, single buffered']
    #allocation6 [shape = 's32[1]{0}', space=sflag, size = 0x4, scoped, tag = 'scoped memory for tpu_custom_call.1']
    #allocation7 [shape = 'u8[512]{0}', space=vmem, size = 0x400, scoped, tag = 'output window, operand 0, single buffered']
    %7 = vsyncpa [#allocation3], 0
    %8 = vsyncpa [#allocation6], 0
    %9 = vsyncpa [#allocation4], 0
    // Predicated region
    $region2: #{tpu_custom_call.1} parent=1 // pred_check
      _
    $region3: #{tpu_custom_call.1} parent=1 // pred_check_branch
      %11 = sbr.rel (0) target = $region5
    $region4: #{tpu_custom_call.1} parent=1 // pred_region
      %s13 = ssub.s32 192, 192
      %14 = vsyncadd [#allocation3], %s13
      %s15 = sshll.u32 [#allocation2], 4
      %s16 = int_to_ptr.vmem [resolvable:$true] %s15
      %21 = dma.hbm_to_vmem [thread:$0]  %s0, 192, %s16, [#allocation3], 64, 64, 4
    $region5: #{tpu_custom_call.1} parent=1 // pred_fallthru
      _
    // Predicated region
    $region6: #{tpu_custom_call.1} parent=1 // pred_check
      _
    $region7: #{tpu_custom_call.1} parent=1 // pred_check_branch
      %23 = sbr.rel (0) target = $region9
    $region8: #{tpu_custom_call.1} parent=1 // pred_region
      %s25 = ssub.s32 768, 768
      %26 = vsyncadd [#allocation6], %s25
      %s27 = sshll.u32 [#allocation5], 4
      %s28 = int_to_ptr.vmem [resolvable:$true] %s27
      %33 = dma.hbm_to_vmem [thread:$0]  %s1, 768, %s28, [#allocation6], 128, 128, 8
    $region9: #{tpu_custom_call.1} parent=1 // pred_fallthru
      _
    // Predicated region
    $region10: #{tpu_custom_call.1} parent=1 // pred_check
      _
    $region11: #{tpu_custom_call.1} parent=1 // pred_check_branch
      %35 = sbr.rel (0) target = $region13
    $region12: #{tpu_custom_call.1} parent=1 // pred_region
      %36 = dma.done [#allocation3], 192
    $region13: #{tpu_custom_call.1} parent=1 // pred_fallthru
      _
    // Predicated region
    $region14: #{tpu_custom_call.1} parent=1 // pred_check
      _
    $region15: #{tpu_custom_call.1} parent=1 // pred_check_branch
      %38 = sbr.rel (0) target = $region17
    $region16: #{tpu_custom_call.1} parent=1 // pred_region
      %39 = dma.done [#allocation6], 768
    $region17: #{tpu_custom_call.1} parent=1 // pred_fallthru
      _
    %v41 = vld [vmem:[#allocation2] sm:$0xf]
    %v42 = vld [vmem:[#allocation2 + $0x4] sm:$0xf]
    %v43 = vld [vmem:[#allocation2 + $0x8] sm:$0xf]
    %v47 = vunpack.c.l.b16 %v41
    %v48 = vunpack.c.l.b16 %v42
    %v49 = vunpack.c.l.b16 %v43
    %v50 = vpack.c.b16 %v48, %v47
    %v51 = vpack.c.b16 %v49, %v49
    %vm52 = vcmask 261120
    %v54 = vsel %vm52, %v50, 0
    %v57 = vsel %vm52, %v51, 0
    %59 = vmatprep.subr.bf16.mxu0 0
    %60 = vmatpush1.bf16.xpose.msra.mxu0 %v54
    %61 = vmatprep.subr.bf16.mxu0 0
    %62 = vmatpush1.bf16.xpose.msra.mxu0 %v57
    %63 = vmatprep.subr.bf16.mxu0 0
    %64 = vmatpush1.bf16.xpose.msra.mxu0 0
    %65 = vmatprep.subr.bf16.mxu0 0
    %66 = vmatpush1.bf16.xpose.msra.mxu0 0
    %67 = vmatprep.subr.bf16.mxu0 0
    %68 = vmatpush1.bf16.xpose.msra.mxu0 0
    %69 = vmatprep.subr.bf16.mxu0 0
    %70 = vmatpush1.bf16.xpose.msra.mxu0 0
    %71 = vmatprep.subr.bf16.mxu0 0
    %72 = vmatpush1.bf16.xpose.msra.mxu0 0
    %73 = vmatprep.subr.bf16.mxu0 0
    %74 = vmatpush1.bf16.xpose.msra.mxu0 0
    %75 = vmatprep.subr.bf16.mxu0 0
    %76 = vmatpush1.bf16.xpose.msra.mxu0 0
    %77 = vmatprep.subr.bf16.mxu0 0
    %78 = vmatpush1.bf16.xpose.msra.mxu0 0
    %79 = vmatprep.subr.bf16.mxu0 0
    %80 = vmatpush1.bf16.xpose.msra.mxu0 0
    %81 = vmatprep.subr.bf16.mxu0 0
    %82 = vmatpush1.bf16.xpose.msra.mxu0 0
    %83 = vmatprep.subr.bf16.mxu0 0
    %84 = vmatpush1.bf16.xpose.msra.mxu0 0
    %85 = vmatprep.subr.bf16.mxu0 0
    %86 = vmatpush1.bf16.xpose.msra.mxu0 0
    %87 = vmatprep.subr.bf16.mxu0 0
    %88 = vmatpush1.bf16.xpose.msra.mxu0 0
    %89 = vmatprep.subr.bf16.mxu0 0
    %90 = vmatpush1.bf16.xpose.msra.mxu0 0
    %91 = vmatprep.mubr.bf16.mxu0 0
    %92 = vmatmul.mubr.bf16.gmra.mrb[0].mxu0 %v54
    %v93 = vpop.f32.mrb[0].mxu0
    %v94 = vadd.f32 0.0, %v93
    %v95 = vpop.f32.mrb[0].mxu0
    %v96 = vpop.f32.mrb[0].mxu0
    %v97 = vadd.f32 0.0, %v96
    %v98 = vpop.f32.mrb[0].mxu0
    %99 = vmatprep.mubr.bf16.mxu0 0
    %100 = vmatmul.mubr.bf16.gmra.mrb[0].mxu0 %v57
    %v101 = vpop.f32.mrb[0].mxu0
    %v102 = vadd.f32 0.0, %v101
    %v103 = vpop.f32.mrb[0].mxu0
    %v104 = vpop.f32.mrb[0].mxu0
    %v105 = vpop.f32.mrb[0].mxu0
    %106 = vdwg.mxu0
    %v107 = vmul.f32 %v94, 14.285714
    %v108 = vmul.f32 %v97, 14.285714
    %v109 = vmul.f32 %v102, 14.285714
    %v110 = vlaneseq
    %v111 = vand.u32 %v110, 127
    %vm112 = vcmask 64512
    %v113 = vsel %vm112, %v107, -inf
    %114 = vmax.xlane.f32.xlu0 %v113
    %v115 = vpop.xlane.xlu0 %114
    %v116 = vsel %vm112, %v108, -inf
    %117 = vmax.xlane.f32.xlu0 %v116
    %v118 = vpop.xlane.xlu0 %117
    %v119 = vsel %vm112, %v109, -inf
    %120 = vmax.xlane.f32.xlu0 %v119
    %v121 = vpop.xlane.xlu0 %120
    %vm122 = vcmp.ge.s32.totalorder %v111, 0
    %vm123 = vcmp.lt.s32.totalorder %v111, 8
    %vm124 = vmand %vm122, %vm123
    %v125 = vsel %vm124, %v115, 0.0
    %v126 = vsel %vm124, %v118, 0.0
    %v127 = vsel %vm124, %v121, 0.0
    %vm128 = vcmask 130112
    %v129 = vsel %vm128, %v107, -inf
    %130 = vmax.xlane.f32.xlu0 %v129
    %v131 = vpop.xlane.xlu0 %130
    %v132 = vsel %vm128, %v108, -inf
    %133 = vmax.xlane.f32.xlu0 %v132
    %v134 = vpop.xlane.xlu0 %133
    %v135 = vsel %vm128, %v109, -inf
    %136 = vmax.xlane.f32.xlu0 %v135
    %v137 = vpop.xlane.xlu0 %136
    %vm138 = vcmp.ge.s32.totalorder %v111, 8
    %vm139 = vcmp.lt.s32.totalorder %v111, 16
    %vm140 = vmand %vm138, %vm139
    %v141 = vsel %vm140, %v131, %v125
    %v142 = vsel %vm140, %v134, %v126
    %v143 = vsel %vm140, %v137, %v127
    %vm144 = vcmask 195712
    %v145 = vsel %vm144, %v107, -inf
    %146 = vmax.xlane.f32.xlu0 %v145
    %v147 = vpop.xlane.xlu0 %146
    %v148 = vsel %vm144, %v108, -inf
    %149 = vmax.xlane.f32.xlu0 %v148
    %v150 = vpop.xlane.xlu0 %149
    %v151 = vsel %vm144, %v109, -inf
    %152 = vmax.xlane.f32.xlu0 %v151
    %v153 = vpop.xlane.xlu0 %152
    %vm154 = vcmp.ge.s32.totalorder %v111, 16
    %vm155 = vcmp.lt.s32.totalorder %v111, 24
    %vm156 = vmand %vm154, %vm155
    %v157 = vsel %vm156, %v147, %v141
    %v158 = vsel %vm156, %v150, %v142
    %v159 = vsel %vm156, %v153, %v143
    %v160 = vsub.f32 %v107, %v157
    %v161 = vsub.f32 %v108, %v158
    %v162 = vsub.f32 %v109, %v159
    %v163 = vmul.f32 %v160, 1.442695
    %v164 = vpow.pop %v163
    %v165 = vmul.f32 %v161, 1.442695
    %v166 = vpow.pop %v165
    %v167 = vmul.f32 %v162, 1.442695
    %v168 = vpow.pop %v167
    %v169 = vld [vmem:[#allocation5] sm:$0xff]
    %v170 = vld [vmem:[#allocation5 + $0x8] sm:$0xff]
    %v171 = vld [vmem:[#allocation5 + $0x10] sm:$0xff]
    %v172 = vmul.f32 %v164, %v169
    %v173 = vmul.f32 %v166, %v170
    %v174 = vmul.f32 %v168, %v171
    %vm175 = vcmask 195584
    %v176 = vsel %vm175, %v172, 0.0
    %177 = vadd.xlane.f32.xlu0 %v176
    %v178 = vpop.xlane.xlu0 %177
    %v179 = vsel %vm175, %v173, 0.0
    %180 = vadd.xlane.f32.xlu0 %v179
    %v181 = vpop.xlane.xlu0 %180
    %v182 = vsel %vm175, %v174, 0.0
    %183 = vadd.xlane.f32.xlu0 %v182
    %v184 = vpop.xlane.xlu0 %183
    %s185 = scalar_lea.vmem [#allocation5], 24
    %v186 = vld [vmem:[%s185] sm:$0xff]
    %v187 = vld [vmem:[%s185 + $0x8] sm:$0xff]
    %v188 = vld [vmem:[%s185 + $0x10] sm:$0xff]
    %v189 = vmul.f32 %v164, %v186
    %v190 = vmul.f32 %v166, %v187
    %v191 = vmul.f32 %v168, %v188
    %v192 = vsel %vm175, %v189, 0.0
    %193 = vadd.xlane.f32.xlu0 %v192
    %v194 = vpop.xlane.xlu0 %193
    %v195 = vsel %vm175, %v190, 0.0
    %196 = vadd.xlane.f32.xlu0 %v195
    %v197 = vpop.xlane.xlu0 %196
    %v198 = vsel %vm175, %v191, 0.0
    %199 = vadd.xlane.f32.xlu0 %v198
    %v200 = vpop.xlane.xlu0 %199
    %v201 = vadd.f32 %v178, 1e-06
    %v202 = vadd.f32 %v181, 1e-06
    %v203 = vadd.f32 %v184, 1e-06
    %v204 = vlog2.pop %v201
    %v205 = vmul.f32 %v204, 0.6931472
    %v206 = vlog2.pop %v202
    %v207 = vmul.f32 %v206, 0.6931472
    %v208 = vlog2.pop %v203
    %v209 = vmul.f32 %v208, 0.6931472
    %v210 = vadd.f32 %v194, 1e-06
    %v211 = vadd.f32 %v197, 1e-06
    %v212 = vadd.f32 %v200, 1e-06
    %v213 = vlog2.pop %v210
    %v214 = vmul.f32 %v213, 0.6931472
    %v215 = vlog2.pop %v211
    %v216 = vmul.f32 %v215, 0.6931472
    %v217 = vlog2.pop %v212
    %v218 = vmul.f32 %v217, 0.6931472
    %v219 = vsub.f32 %v205, %v214
    %v220 = vsub.f32 %v207, %v216
    %v221 = vsub.f32 %v209, %v218
    %v222 = vadd.f32 %v219, %v220
    %v223 = vadd.f32 %v222, %v221
    %v224 = vrot.slane %v223, 4
    %v225 = vadd.f32 %v223, %v224
    %v226 = vrot.slane %v225, 2
    %v227 = vadd.f32 %v225, %v226
    %v228 = vrot.slane %v227, 1
    %v229 = vadd.f32 %v227, %v228
    %v230 = vmul.f32 %v229, -0.041666668
    %vm231 = vcmask 0
    %232 = vst.msk [vmem:[#allocation7] sm:$0x1] %vm231, %v230
    // Predicated region
    $region18: #{tpu_custom_call.1} parent=1 // pred_check
      _
    $region19: #{tpu_custom_call.1} parent=1 // pred_check_branch
      %234 = sbr.rel (0) target = $region21
    $region20: #{tpu_custom_call.1} parent=1 // pred_region
      %s236 = ssub.s32 16, 16
      %237 = vsyncadd [#allocation4], %s236
      %s239 = sshll.u32 [#allocation7], 4
      %s240 = int_to_ptr.vmem [resolvable:$true] %s239
      %242 = dma.vmem_to_hbm [thread:$0]  %s240, 16, %s2, [#allocation4]
    $region21: #{tpu_custom_call.1} parent=1 // pred_fallthru
      _
    // Predicated region
    $region22: #{tpu_custom_call.1} parent=1 // pred_check
      _
    $region23: #{tpu_custom_call.1} parent=1 // pred_check_branch
      %244 = sbr.rel (0) target = $region25
    $region24: #{tpu_custom_call.1} parent=1 // pred_region
      %245 = dma.done [#allocation4], 16
    $region25: #{tpu_custom_call.1} parent=1 // pred_fallthru
      _
    %246 = vsyncpa [#allocation3], 1
    %247 = vsyncpa [#allocation6], 1
    %248 = vsyncpa [#allocation4], 1

</llo_original>
